<compile_context>
chip_gen: v7x
topology: tpu7x:2x2x1
jax: 0.10.0
libtpu: 0.0.40
codegen_flags: <defaults>
</compile_context>

<pallas_src>
from functools import partial

import jax
import jax.numpy as jnp
from jax import lax
from jax.experimental import pallas as pl
from jax.experimental.pallas import tpu as pltpu


# contract the last (feature) dim of both operands: (out, in) x (batch, in) -> (out, batch)
_NT_DIMS = (((1,), (1,)), ((), ()))


# ----------------------------------------------------------------------------- kernel
def deeponet_kernel(
    x_ref, l_ref,                                   # (TILE_B, b_dim), (TILE_B, t_dim)
    wb1_ref, bb1_ref, wb2_ref, bb2_ref, wb3_ref, bb3_ref,
    wt1_ref, bt1_ref, wt2_ref, bt2_ref, wt3_ref, bt3_ref,
    bias_ref,                                       # (1, 1) scalar in SMEM
    out_ref,                                        # (1, TILE_B) lane-dense output
    *, compute_dtype,
):
    def mlp(z_ref, w1, b1, w2, b2, w3, b3):
        z = z_ref[...].astype(compute_dtype)        # (TILE_B, in)
        # layer 1: NT contraction -> batch on the lane/N axis of the result (no wrapper transpose)
        h = lax.dot_general(w1[...], z, _NT_DIMS,
                            preferred_element_type=jnp.float32) + b1[...]
        h = jnp.maximum(h, 0.0)
        h = jnp.dot(w2[...], h.astype(compute_dtype),
                    preferred_element_type=jnp.float32) + b2[...]
        h = jnp.maximum(h, 0.0)
        h = jnp.dot(w3[...], h.astype(compute_dtype),
                    preferred_element_type=jnp.float32) + b3[...]
        return h                                    # (64, TILE_B), f32

    bx = mlp(x_ref, wb1_ref, bb1_ref, wb2_ref, bb2_ref, wb3_ref, bb3_ref)   # branch
    tl = mlp(l_ref, wt1_ref, bt1_ref, wt2_ref, bt2_ref, wt3_ref, bt3_ref)   # trunk

    # einsum('bi,bi->b'): elementwise product + sublane reduce -> (1, TILE_B) lane-dense
    out_ref[...] = jnp.sum(bx * tl, axis=0, keepdims=True) + bias_ref[0, 0]


# ----------------------------------------------------------------------------- wrapper
def _prep_params(params, compute_dtype):
    """Weights to (out, in) orientation (matmul LHS), biases to (out, 1) columns."""
    wt = lambda w: w.T.astype(compute_dtype)        # (out, in)
    bt = lambda b: b.T.astype(jnp.float32)          # (out, 1)
    return (wt(params["wb1"]), bt(params["bb1"]),
            wt(params["wb2"]), bt(params["bb2"]),
            wt(params["wb3"]), bt(params["bb3"]),
            wt(params["wt1"]), bt(params["bt1"]),
            wt(params["wt2"]), bt(params["bt2"]),
            wt(params["wt3"]), bt(params["bt3"]))


def deeponet_forward(x, l, params, *, tile_b=1024, compute_dtype=jnp.float32):
    B, b_dim = x.shape
    t_dim = l.shape[1]

    # batch tile: multiple of 128 (lane width), never wider than the padded batch requires.
    tile_b = max(128, min(tile_b, pl.cdiv(B, 128) * 128))
    tile_b = pl.cdiv(tile_b, 128) * 128
    B_pad = pl.cdiv(B, tile_b) * tile_b

    if B_pad != B:                                  # only copy when padding is actually needed
        x = jnp.pad(x, ((0, B_pad - B), (0, 0)))
        l = jnp.pad(l, ((0, B_pad - B), (0, 0)))

    packed = _prep_params(params, compute_dtype)
    bias = params["b"].reshape(1, 1).astype(jnp.float32)

    grid = (B_pad // tile_b,)
    batch_spec = lambda d: pl.BlockSpec((tile_b, d), lambda i: (i, 0))
    resident = lambda a: pl.BlockSpec(a.shape, lambda i: (0, 0))   # constant index_map -> VMEM-resident

    out = pl.pallas_call(
        partial(deeponet_kernel, compute_dtype=compute_dtype),
        out_shape=jax.ShapeDtypeStruct((1, B_pad), jnp.float32),
        grid=grid,
        in_specs=[batch_spec(b_dim), batch_spec(t_dim)]
                 + [resident(a) for a in packed]
                 + [pl.BlockSpec(memory_space=pltpu.MemorySpace.SMEM)],    # scalar bias
        out_specs=pl.BlockSpec((1, tile_b), lambda i: (0, i)),             # lane-dense output
        compiler_params=pltpu.CompilerParams(
            dimension_semantics=("parallel",),      # shard batch tiles across TCs on v7x
        ),
    )(x, l, *packed, bias)

    return out[0, :B][:, None]                      # (B, 1)


# ----------------------------------------------------------------------------- params / reference
def init_params(key, b_dim, t_dim):
    """Deterministic synthetic init (PyTorch-Linear-like uniform fan-in scaling)."""
    ks = jax.random.split(key, 12)

    def linear(kw, kb, fan_in, fan_out):
        bound = 1.0 / jnp.sqrt(jnp.float32(fan_in))
        w = jax.random.uniform(kw, (fan_in, fan_out), jnp.float32, -bound, bound)
        b = jax.random.uniform(kb, (1, fan_out), jnp.float32, -bound, bound)
        return w, b

    wb1, bb1 = linear(ks[0], ks[1], b_dim, 32)
    wb2, bb2 = linear(ks[2], ks[3], 32, 32)
    wb3, bb3 = linear(ks[4], ks[5], 32, 64)
    wt1, bt1 = linear(ks[6], ks[7], t_dim, 32)
    wt2, bt2 = linear(ks[8], ks[9], 32, 32)
    wt3, bt3 = linear(ks[10], ks[11], 32, 64)

    return dict(
        wb1=wb1, bb1=bb1, wb2=wb2, bb2=bb2, wb3=wb3, bb3=bb3,
        wt1=wt1, bt1=bt1, wt2=wt2, bt2=bt2, wt3=wt3, bt3=bt3,
        b=jnp.zeros((1, 1), jnp.float32),           # Parameter(torch.zeros(1))
    )


def reference_forward(x, l, p):
    def mlp(z, w1, b1, w2, b2, w3, b3):
        z = jnp.maximum(z @ w1 + b1, 0.0)
        z = jnp.maximum(z @ w2 + b2, 0.0)
        return z @ w3 + b3

    bx = mlp(x, p["wb1"], p["bb1"], p["wb2"], p["bb2"], p["wb3"], p["bb3"])
    tl = mlp(l, p["wt1"], p["bt1"], p["wt2"], p["bt2"], p["wt3"], p["bt3"])
    res = jnp.einsum("bi,bi->b", bx, tl)
    return res[:, None] + p["b"][0, 0]


# ----------------------------------------------------------------------------- test
if __name__ == "__main__":
    key = jax.random.PRNGKey(0)
    k_params, k_x, k_l, k_x2, k_l2 = jax.random.split(key, 5)

    b_dim, t_dim = 16, 16
    params = init_params(k_params, b_dim, t_dim)

    # small batch: single 128-wide grid step (batch padded 8 -> 128)
    B = 8
    x = jax.random.normal(k_x, (B, b_dim), jnp.float32)
    l = jax.random.normal(k_l, (B, t_dim), jnp.float32)

    out = jax.block_until_ready(deeponet_forward(x, l, params))
    ref = reference_forward(x, l, params)
    assert out.shape == (B, 1), out.shape
    # MXU matmuls / different accumulation order vs. XLA reference -> small f32 tolerance
    assert jnp.allclose(out, ref, rtol=1e-3, atol=1e-3), (out, ref)

    # larger batch exercising multiple grid steps (300 -> 384 padded, 3 tiles of 128)
    B2 = 300
    x2 = jax.random.normal(k_x2, (B2, b_dim), jnp.float32)
    l2 = jax.random.normal(k_l2, (B2, t_dim), jnp.float32)
    out2 = jax.block_until_ready(deeponet_forward(x2, l2, params, tile_b=128))
    ref2 = reference_forward(x2, l2, params)
    assert out2.shape == (B2, 1), out2.shape
    assert jnp.allclose(out2, ref2, rtol=1e-3, atol=1e-3)

    # default tile size path (auto-capped to one 384-wide tile)
    out3 = jax.block_until_ready(deeponet_forward(x2, l2, params))
    assert jnp.allclose(out3, ref2, rtol=1e-3, atol=1e-3)

    # bf16 MXU fast path (v6e/v7x): bf16 matmul inputs, f32 accumulation/elementwise
    out_bf16 = jax.block_until_ready(
        deeponet_forward(x2, l2, params, tile_b=128, compute_dtype=jnp.bfloat16))
    assert jnp.allclose(out_bf16, ref2, rtol=5e-2, atol=5e-2)

    print("KERNEL_OK")
</pallas_src>

<mosaic_0001>
module attributes {stable_mosaic.version = 11 : i64} {
  func.func @deeponet_kernel(%arg0: i32, %arg1: memref<128x16xf32, #tpu.memory_space<vmem>>, %arg2: memref<128x16xf32, #tpu.memory_space<vmem>>, %arg3: memref<32x16xf32, #tpu.memory_space<vmem>>, %arg4: memref<32x1xf32, #tpu.memory_space<vmem>>, %arg5: memref<32x32xf32, #tpu.memory_space<vmem>>, %arg6: memref<32x1xf32, #tpu.memory_space<vmem>>, %arg7: memref<64x32xf32, #tpu.memory_space<vmem>>, %arg8: memref<64x1xf32, #tpu.memory_space<vmem>>, %arg9: memref<32x16xf32, #tpu.memory_space<vmem>>, %arg10: memref<32x1xf32, #tpu.memory_space<vmem>>, %arg11: memref<32x32xf32, #tpu.memory_space<vmem>>, %arg12: memref<32x1xf32, #tpu.memory_space<vmem>>, %arg13: memref<64x32xf32, #tpu.memory_space<vmem>>, %arg14: memref<64x1xf32, #tpu.memory_space<vmem>>, %arg15: memref<1x1xf32, #tpu.memory_space<smem>>, %arg16: memref<1x128xf32, #tpu.memory_space<vmem>>) attributes {dimension_semantics = [#tpu.dimension_semantics<parallel>], iteration_bounds = array<i64: 1>, scalar_prefetch = 0 : i64, scratch_operands = 0 : i64, tpu.core_type = #tpu.core_type<tc>, window_params = [{transform_indices = @transform_0, window_bounds = array<i64: 128, 16>}, {transform_indices = @transform_1, window_bounds = array<i64: 128, 16>}, {pipeline_mode = #tpu.pipeline_mode<synchronous>, transform_indices = @transform_2, window_bounds = array<i64: 32, 16>}, {pipeline_mode = #tpu.pipeline_mode<synchronous>, transform_indices = @transform_3, window_bounds = array<i64: 32, 1>}, {pipeline_mode = #tpu.pipeline_mode<synchronous>, transform_indices = @transform_4, window_bounds = array<i64: 32, 32>}, {pipeline_mode = #tpu.pipeline_mode<synchronous>, transform_indices = @transform_5, window_bounds = array<i64: 32, 1>}, {pipeline_mode = #tpu.pipeline_mode<synchronous>, transform_indices = @transform_6, window_bounds = array<i64: 64, 32>}, {pipeline_mode = #tpu.pipeline_mode<synchronous>, transform_indices = @transform_7, window_bounds = array<i64: 64, 1>}, {pipeline_mode = #tpu.pipeline_mode<synchronous>, transform_indices = @transform_8, window_bounds = array<i64: 32, 16>}, {pipeline_mode = #tpu.pipeline_mode<synchronous>, transform_indices = @transform_9, window_bounds = array<i64: 32, 1>}, {pipeline_mode = #tpu.pipeline_mode<synchronous>, transform_indices = @transform_10, window_bounds = array<i64: 32, 32>}, {pipeline_mode = #tpu.pipeline_mode<synchronous>, transform_indices = @transform_11, window_bounds = array<i64: 32, 1>}, {pipeline_mode = #tpu.pipeline_mode<synchronous>, transform_indices = @transform_12, window_bounds = array<i64: 64, 32>}, {pipeline_mode = #tpu.pipeline_mode<synchronous>, transform_indices = @transform_13, window_bounds = array<i64: 64, 1>}, {transform_indices = @transform_14, window_bounds = array<i64: 1, 1>}, {transform_indices = @transform_15, window_bounds = array<i64: 1, 128>}]} {
    %c0 = arith.constant 0 : index
    %c0_0 = arith.constant 0 : index
    %0 = vector.load %arg1[%c0, %c0_0] : memref<128x16xf32, #tpu.memory_space<vmem>>, vector<128x16xf32>
    %c0_1 = arith.constant 0 : index
    %c0_2 = arith.constant 0 : index
    %1 = vector.load %arg3[%c0_1, %c0_2] : memref<32x16xf32, #tpu.memory_space<vmem>>, vector<32x16xf32>
    %cst = arith.constant dense<0.000000e+00> : vector<32x128xf32>
    %2 = tpu.matmul %1, %0, %cst {dimension_numbers = #tpu.dot_dimension_numbers<[1], [1], [0], [0], [0, 0, 1, 0], [], []>} : vector<32x16xf32>, vector<128x16xf32>, vector<32x128xf32> -> vector<32x128xf32>
    %c0_3 = arith.constant 0 : index
    %c0_4 = arith.constant 0 : index
    %3 = vector.load %arg4[%c0_3, %c0_4] : memref<32x1xf32, #tpu.memory_space<vmem>>, vector<32x1xf32>
    %4 = vector.broadcast %3 : vector<32x1xf32> to vector<32x128xf32>
    %5 = arith.addf %2, %4 : vector<32x128xf32>
    %cst_5 = arith.constant 0.000000e+00 : f32
    %6 = vector.broadcast %cst_5 : f32 to vector<32x128xf32>
    %7 = arith.maximumf %5, %6 : vector<32x128xf32>
    %c0_6 = arith.constant 0 : index
    %c0_7 = arith.constant 0 : index
    %8 = vector.load %arg5[%c0_6, %c0_7] : memref<32x32xf32, #tpu.memory_space<vmem>>, vector<32x32xf32>
    %cst_8 = arith.constant dense<0.000000e+00> : vector<32x128xf32>
    %9 = tpu.matmul %8, %7, %cst_8 {dimension_numbers = #tpu.dot_dimension_numbers<[1], [0], [0], [1], [0, 0, 1, 1], [], []>} : vector<32x32xf32>, vector<32x128xf32>, vector<32x128xf32> -> vector<32x128xf32>
    %c0_9 = arith.constant 0 : index
    %c0_10 = arith.constant 0 : index
    %10 = vector.load %arg6[%c0_9, %c0_10] : memref<32x1xf32, #tpu.memory_space<vmem>>, vector<32x1xf32>
    %11 = vector.broadcast %10 : vector<32x1xf32> to vector<32x128xf32>
    %12 = arith.addf %9, %11 : vector<32x128xf32>
    %cst_11 = arith.constant 0.000000e+00 : f32
    %13 = vector.broadcast %cst_11 : f32 to vector<32x128xf32>
    %14 = arith.maximumf %12, %13 : vector<32x128xf32>
    %c0_12 = arith.constant 0 : index
    %c0_13 = arith.constant 0 : index
    %15 = vector.load %arg7[%c0_12, %c0_13] : memref<64x32xf32, #tpu.memory_space<vmem>>, vector<64x32xf32>
    %cst_14 = arith.constant dense<0.000000e+00> : vector<64x128xf32>
    %16 = tpu.matmul %15, %14, %cst_14 {dimension_numbers = #tpu.dot_dimension_numbers<[1], [0], [0], [1], [0, 0, 1, 1], [], []>} : vector<64x32xf32>, vector<32x128xf32>, vector<64x128xf32> -> vector<64x128xf32>
    %c0_15 = arith.constant 0 : index
    %c0_16 = arith.constant 0 : index
    %17 = vector.load %arg8[%c0_15, %c0_16] : memref<64x1xf32, #tpu.memory_space<vmem>>, vector<64x1xf32>
    %18 = vector.broadcast %17 : vector<64x1xf32> to vector<64x128xf32>
    %19 = arith.addf %16, %18 : vector<64x128xf32>
    %c0_17 = arith.constant 0 : index
    %c0_18 = arith.constant 0 : index
    %20 = vector.load %arg2[%c0_17, %c0_18] : memref<128x16xf32, #tpu.memory_space<vmem>>, vector<128x16xf32>
    %c0_19 = arith.constant 0 : index
    %c0_20 = arith.constant 0 : index
    %21 = vector.load %arg9[%c0_19, %c0_20] : memref<32x16xf32, #tpu.memory_space<vmem>>, vector<32x16xf32>
    %cst_21 = arith.constant dense<0.000000e+00> : vector<32x128xf32>
    %22 = tpu.matmul %21, %20, %cst_21 {dimension_numbers = #tpu.dot_dimension_numbers<[1], [1], [0], [0], [0, 0, 1, 0], [], []>} : vector<32x16xf32>, vector<128x16xf32>, vector<32x128xf32> -> vector<32x128xf32>
    %c0_22 = arith.constant 0 : index
    %c0_23 = arith.constant 0 : index
    %23 = vector.load %arg10[%c0_22, %c0_23] : memref<32x1xf32, #tpu.memory_space<vmem>>, vector<32x1xf32>
    %24 = vector.broadcast %23 : vector<32x1xf32> to vector<32x128xf32>
    %25 = arith.addf %22, %24 : vector<32x128xf32>
    %cst_24 = arith.constant 0.000000e+00 : f32
    %26 = vector.broadcast %cst_24 : f32 to vector<32x128xf32>
    %27 = arith.maximumf %25, %26 : vector<32x128xf32>
    %c0_25 = arith.constant 0 : index
    %c0_26 = arith.constant 0 : index
    %28 = vector.load %arg11[%c0_25, %c0_26] : memref<32x32xf32, #tpu.memory_space<vmem>>, vector<32x32xf32>
    %cst_27 = arith.constant dense<0.000000e+00> : vector<32x128xf32>
    %29 = tpu.matmul %28, %27, %cst_27 {dimension_numbers = #tpu.dot_dimension_numbers<[1], [0], [0], [1], [0, 0, 1, 1], [], []>} : vector<32x32xf32>, vector<32x128xf32>, vector<32x128xf32> -> vector<32x128xf32>
    %c0_28 = arith.constant 0 : index
    %c0_29 = arith.constant 0 : index
    %30 = vector.load %arg12[%c0_28, %c0_29] : memref<32x1xf32, #tpu.memory_space<vmem>>, vector<32x1xf32>
    %31 = vector.broadcast %30 : vector<32x1xf32> to vector<32x128xf32>
    %32 = arith.addf %29, %31 : vector<32x128xf32>
    %cst_30 = arith.constant 0.000000e+00 : f32
    %33 = vector.broadcast %cst_30 : f32 to vector<32x128xf32>
    %34 = arith.maximumf %32, %33 : vector<32x128xf32>
    %c0_31 = arith.constant 0 : index
    %c0_32 = arith.constant 0 : index
    %35 = vector.load %arg13[%c0_31, %c0_32] : memref<64x32xf32, #tpu.memory_space<vmem>>, vector<64x32xf32>
    %cst_33 = arith.constant dense<0.000000e+00> : vector<64x128xf32>
    %36 = tpu.matmul %35, %34, %cst_33 {dimension_numbers = #tpu.dot_dimension_numbers<[1], [0], [0], [1], [0, 0, 1, 1], [], []>} : vector<64x32xf32>, vector<32x128xf32>, vector<64x128xf32> -> vector<64x128xf32>
    %c0_34 = arith.constant 0 : index
    %c0_35 = arith.constant 0 : index
    %37 = vector.load %arg14[%c0_34, %c0_35] : memref<64x1xf32, #tpu.memory_space<vmem>>, vector<64x1xf32>
    %38 = vector.broadcast %37 : vector<64x1xf32> to vector<64x128xf32>
    %39 = arith.addf %36, %38 : vector<64x128xf32>
    %40 = arith.mulf %19, %39 : vector<64x128xf32>
    %cst_36 = arith.constant dense<0.000000e+00> : vector<128xf32>
    %41 = vector.multi_reduction <add>, %40, %cst_36 [0] : vector<64x128xf32> to vector<128xf32>
    %42 = vector.shape_cast %41 : vector<128xf32> to vector<1x128xf32>
    %c0_37 = arith.constant 0 : index
    %c0_38 = arith.constant 0 : index
    %43 = memref.load %arg15[%c0_37, %c0_38] : memref<1x1xf32, #tpu.memory_space<smem>>
    %44 = vector.broadcast %43 : f32 to vector<1x128xf32>
    %45 = arith.addf %42, %44 : vector<1x128xf32>
    %c0_39 = arith.constant 0 : index
    %c0_40 = arith.constant 0 : index
    %46 = vector.load %arg16[%c0_39, %c0_40] : memref<1x128xf32, #tpu.memory_space<vmem>>, vector<1x128xf32>
    tpu.vector_store %arg16[%c0_39, %c0_40], %45 {strides = array<i32>} : memref<1x128xf32, #tpu.memory_space<vmem>>, vector<1x128xf32>,
    return
  }
  func.func @transform_0(%arg0: i32) -> (i32, i32) {
    %c0_i32 = arith.constant 0 : i32
    %c0_i32_0 = arith.constant 0 : i32
    return %arg0, %c0_i32 : i32, i32
  }
  func.func @transform_1(%arg0: i32) -> (i32, i32) {
    %c0_i32 = arith.constant 0 : i32
    %c0_i32_0 = arith.constant 0 : i32
    return %arg0, %c0_i32 : i32, i32
  }
  func.func @transform_2(%arg0: i32) -> (i32, i32) {
    %c0_i32 = arith.constant 0 : i32
    %c0_i32_0 = arith.constant 0 : i32
    %c0_i32_1 = arith.constant 0 : i32
    return %c0_i32, %c0_i32_0 : i32, i32
  }
  func.func @transform_3(%arg0: i32) -> (i32, i32) {
    %c0_i32 = arith.constant 0 : i32
    %c0_i32_0 = arith.constant 0 : i32
    %c0_i32_1 = arith.constant 0 : i32
    return %c0_i32, %c0_i32_0 : i32, i32
  }
  func.func @transform_4(%arg0: i32) -> (i32, i32) {
    %c0_i32 = arith.constant 0 : i32
    %c0_i32_0 = arith.constant 0 : i32
    %c0_i32_1 = arith.constant 0 : i32
    return %c0_i32, %c0_i32_0 : i32, i32
  }
  func.func @transform_5(%arg0: i32) -> (i32, i32) {
    %c0_i32 = arith.constant 0 : i32
    %c0_i32_0 = arith.constant 0 : i32
    %c0_i32_1 = arith.constant 0 : i32
    return %c0_i32, %c0_i32_0 : i32, i32
  }
  func.func @transform_6(%arg0: i32) -> (i32, i32) {
    %c0_i32 = arith.constant 0 : i32
    %c0_i32_0 = arith.constant 0 : i32
    %c0_i32_1 = arith.constant 0 : i32
    return %c0_i32, %c0_i32_0 : i32, i32
  }
  func.func @transform_7(%arg0: i32) -> (i32, i32) {
    %c0_i32 = arith.constant 0 : i32
    %c0_i32_0 = arith.constant 0 : i32
    %c0_i32_1 = arith.constant 0 : i32
    return %c0_i32, %c0_i32_0 : i32, i32
  }
  func.func @transform_8(%arg0: i32) -> (i32, i32) {
    %c0_i32 = arith.constant 0 : i32
    %c0_i32_0 = arith.constant 0 : i32
    %c0_i32_1 = arith.constant 0 : i32
    return %c0_i32, %c0_i32_0 : i32, i32
  }
  func.func @transform_9(%arg0: i32) -> (i32, i32) {
    %c0_i32 = arith.constant 0 : i32
    %c0_i32_0 = arith.constant 0 : i32
    %c0_i32_1 = arith.constant 0 : i32
    return %c0_i32, %c0_i32_0 : i32, i32
  }
  func.func @transform_10(%arg0: i32) -> (i32, i32) {
    %c0_i32 = arith.constant 0 : i32
    %c0_i32_0 = arith.constant 0 : i32
    %c0_i32_1 = arith.constant 0 : i32
    return %c0_i32, %c0_i32_0 : i32, i32
  }
  func.func @transform_11(%arg0: i32) -> (i32, i32) {
    %c0_i32 = arith.constant 0 : i32
    %c0_i32_0 = arith.constant 0 : i32
    %c0_i32_1 = arith.constant 0 : i32
    return %c0_i32, %c0_i32_0 : i32, i32
  }
  func.func @transform_12(%arg0: i32) -> (i32, i32) {
    %c0_i32 = arith.constant 0 : i32
    %c0_i32_0 = arith.constant 0 : i32
    %c0_i32_1 = arith.constant 0 : i32
    return %c0_i32, %c0_i32_0 : i32, i32
  }
  func.func @transform_13(%arg0: i32) -> (i32, i32) {
    %c0_i32 = arith.constant 0 : i32
    %c0_i32_0 = arith.constant 0 : i32
    %c0_i32_1 = arith.constant 0 : i32
    return %c0_i32, %c0_i32_0 : i32, i32
  }
  func.func @transform_14(%arg0: i32) -> (i32, i32) {
    %c0_i32 = arith.constant 0 : i32
    %c0_i32_0 = arith.constant 0 : i32
    %c0_i32_1 = arith.constant 0 : i32
    return %c0_i32, %c0_i32_0 : i32, i32
  }
  func.func @transform_15(%arg0: i32) -> (i32, i32) {
    %c0_i32 = arith.constant 0 : i32
    %c0_i32_0 = arith.constant 0 : i32
    return %c0_i32, %arg0 : i32, i32
  }
}

</mosaic_0001>

<llo_original>
// kernel: tpu_custom_call.1
$region0: #{tpu_custom_call.1}
  #allocation0 [shape = 'u32[]', space=smem, size = 0x4, offset = 0x4, fixed_abs, tag = 'smem constant byte address 0x4 - core index']
  #allocation1 [shape = 'u32[144,128]{1,0:T(1,128)}', space=vmem, size = 0x12000, scoped, tag = 'internal scratch']
  #allocation2 [shape = 'f32[1,1]{1,0:T(1,128)S(6)}', space=smem, size = 0x200, scoped, tag = 'scoped memory for tpu_custom_call.1']
  %s0 = inlined_call_operand.vmem [shape: f32[128,16], index: 0, kind: input, shape index: {}]
  %s1 = inlined_call_operand.vmem [shape: f32[128,16], index: 1, kind: input, shape index: {}]
  %s2 = inlined_call_operand.vmem [shape: f32[32,16], index: 2, kind: input, shape index: {}]
  %s3 = inlined_call_operand.vmem [shape: f32[32,1], index: 3, kind: input, shape index: {}]
  %s4 = inlined_call_operand.vmem [shape: f32[32,32], index: 4, kind: input, shape index: {}]
  %s5 = inlined_call_operand.vmem [shape: f32[32,1], index: 5, kind: input, shape index: {}]
  %s6 = inlined_call_operand.vmem [shape: f32[64,32], index: 6, kind: input, shape index: {}]
  %s7 = inlined_call_operand.vmem [shape: f32[64,1], index: 7, kind: input, shape index: {}]
  %s8 = inlined_call_operand.vmem [shape: f32[32,16], index: 8, kind: input, shape index: {}]
  %s9 = inlined_call_operand.vmem [shape: f32[32,1], index: 9, kind: input, shape index: {}]
  %s10 = inlined_call_operand.vmem [shape: f32[32,32], index: 10, kind: input, shape index: {}]
  %s11 = inlined_call_operand.vmem [shape: f32[32,1], index: 11, kind: input, shape index: {}]
  %s12 = inlined_call_operand.vmem [shape: f32[64,32], index: 12, kind: input, shape index: {}]
  %s13 = inlined_call_operand.vmem [shape: f32[64,1], index: 13, kind: input, shape index: {}]
  %s14 = inlined_call_operand.<no memory space> [shape: f32[1,1], index: 14, kind: input, shape index: {}]
  %s15 = inlined_call_operand.hbm [shape: f32[1,128], index: 15, kind: output, shape index: {}]
  %s16 = sld [smem:[#allocation0]]
  $region70: #{tpu_custom_call.1} parent=0
    _
  %s18 = ssub.s32 1, %s16
  %s19 = scalar_select 0, %s18, %s16
  %20 = sst [smem:[#allocation2]] %s14
  $region1: #{tpu_custom_call.1} parent=0
    #allocation3 [shape = 'u8[512]{0}', space=vmem, size = 0x400, scoped, tag = 'output window, operand 0, single buffered']
    #allocation4 [shape = 's32[1]{0}', space=sflag, size = 0x4, scoped, tag = 'scoped memory for tpu_custom_call.1']
    %21 = vsyncpa [#allocation4], 0
    // Predicated region
    $region2: #{tpu_custom_call.1} parent=1 // pred_check
      _
    $region3: #{tpu_custom_call.1} parent=1 // pred_check_branch
      %23 = sbr.rel (0) target = $region5
    $region4: #{tpu_custom_call.1} parent=1 // pred_region
      _
    $region5: #{tpu_custom_call.1} parent=1 // pred_fallthru
      _
    // Predicated region
    $region6: #{tpu_custom_call.1} parent=1 // pred_check
      _
    $region7: #{tpu_custom_call.1} parent=1 // pred_check_branch
      %25 = sbr.rel (0) target = $region9
    $region8: #{tpu_custom_call.1} parent=1 // pred_region
      _
    $region9: #{tpu_custom_call.1} parent=1 // pred_fallthru
      _
    // Predicated region
    $region10: #{tpu_custom_call.1} parent=1 // pred_check
      _
    $region11: #{tpu_custom_call.1} parent=1 // pred_check_branch
      %27 = sbr.rel (0) target = $region13
    $region12: #{tpu_custom_call.1} parent=1 // pred_region
      _
    $region13: #{tpu_custom_call.1} parent=1 // pred_fallthru
      _
    // Predicated region
    $region14: #{tpu_custom_call.1} parent=1 // pred_check
      _
    $region15: #{tpu_custom_call.1} parent=1 // pred_check_branch
      %29 = sbr.rel (0) target = $region17
    $region16: #{tpu_custom_call.1} parent=1 // pred_region
      _
    $region17: #{tpu_custom_call.1} parent=1 // pred_fallthru
      _
    // Predicated region
    $region18: #{tpu_custom_call.1} parent=1 // pred_check
      _
    $region19: #{tpu_custom_call.1} parent=1 // pred_check_branch
      %31 = sbr.rel (0) target = $region21
    $region20: #{tpu_custom_call.1} parent=1 // pred_region
      _
    $region21: #{tpu_custom_call.1} parent=1 // pred_fallthru
      _
    // Predicated region
    $region22: #{tpu_custom_call.1} parent=1 // pred_check
      _
    $region23: #{tpu_custom_call.1} parent=1 // pred_check_branch
      %33 = sbr.rel (0) target = $region25
    $region24: #{tpu_custom_call.1} parent=1 // pred_region
      _
    $region25: #{tpu_custom_call.1} parent=1 // pred_fallthru
      _
    // Predicated region
    $region26: #{tpu_custom_call.1} parent=1 // pred_check
      _
    $region27: #{tpu_custom_call.1} parent=1 // pred_check_branch
      %35 = sbr.rel (0) target = $region29
    $region28: #{tpu_custom_call.1} parent=1 // pred_region
      _
    $region29: #{tpu_custom_call.1} parent=1 // pred_fallthru
      _
    // Predicated region
    $region30: #{tpu_custom_call.1} parent=1 // pred_check
      _
    $region31: #{tpu_custom_call.1} parent=1 // pred_check_branch
      %37 = sbr.rel (0) target = $region33
    $region32: #{tpu_custom_call.1} parent=1 // pred_region
      _
    $region33: #{tpu_custom_call.1} parent=1 // pred_fallthru
      _
    // Predicated region
    $region34: #{tpu_custom_call.1} parent=1 // pred_check
      _
    $region35: #{tpu_custom_call.1} parent=1 // pred_check_branch
      %39 = sbr.rel (0) target = $region37
    $region36: #{tpu_custom_call.1} parent=1 // pred_region
      _
    $region37: #{tpu_custom_call.1} parent=1 // pred_fallthru
      _
    // Predicated region
    $region38: #{tpu_custom_call.1} parent=1 // pred_check
      _
    $region39: #{tpu_custom_call.1} parent=1 // pred_check_branch
      %41 = sbr.rel (0) target = $region41
    $region40: #{tpu_custom_call.1} parent=1 // pred_region
      _
    $region41: #{tpu_custom_call.1} parent=1 // pred_fallthru
      _
    // Predicated region
    $region42: #{tpu_custom_call.1} parent=1 // pred_check
      _
    $region43: #{tpu_custom_call.1} parent=1 // pred_check_branch
      %43 = sbr.rel (0) target = $region45
    $region44: #{tpu_custom_call.1} parent=1 // pred_region
      _
    $region45: #{tpu_custom_call.1} parent=1 // pred_fallthru
      _
    // Predicated region
    $region46: #{tpu_custom_call.1} parent=1 // pred_check
      _
    $region47: #{tpu_custom_call.1} parent=1 // pred_check_branch
      %45 = sbr.rel (0) target = $region49
    $region48: #{tpu_custom_call.1} parent=1 // pred_region
      _
    $region49: #{tpu_custom_call.1} parent=1 // pred_fallthru
      _
    // Predicated region
    $region50: #{tpu_custom_call.1} parent=1 // pred_check
      _
    $region51: #{tpu_custom_call.1} parent=1 // pred_check_branch
      %47 = sbr.rel (0) target = $region53
    $region52: #{tpu_custom_call.1} parent=1 // pred_region
      _
    $region53: #{tpu_custom_call.1} parent=1 // pred_fallthru
      _
    // Predicated region
    $region54: #{tpu_custom_call.1} parent=1 // pred_check
      _
    $region55: #{tpu_custom_call.1} parent=1 // pred_check_branch
      %49 = sbr.rel (0) target = $region57
    $region56: #{tpu_custom_call.1} parent=1 // pred_region
      _
    $region57: #{tpu_custom_call.1} parent=1 // pred_fallthru
      _
    // Predicated region
    $region58: #{tpu_custom_call.1} parent=1 // pred_check
      _
    $region59: #{tpu_custom_call.1} parent=1 // pred_check_branch
      %51 = sbr.rel (0) target = $region61
    $region60: #{tpu_custom_call.1} parent=1 // pred_region
      _
    $region61: #{tpu_custom_call.1} parent=1 // pred_fallthru
      _
    %v52 = vld [vmem:[%s0] sm:$0xff]
    %v53 = vld [vmem:[%s0 + $0x8] sm:$0xff]
    %v54 = vld [vmem:[%s0 + $0x10] sm:$0xff]
    %v55 = vld [vmem:[%s0 + $0x18] sm:$0xff]
    %v56 = vld [vmem:[%s0 + $0x20] sm:$0xff]
    %v57 = vld [vmem:[%s0 + $0x28] sm:$0xff]
    %v58 = vld [vmem:[%s0 + $0x30] sm:$0xff]
    %v59 = vld [vmem:[%s0 + $0x38] sm:$0xff]
    %v60 = vld [vmem:[%s0 + $0x40] sm:$0xff]
    %v61 = vld [vmem:[%s0 + $0x48] sm:$0xff]
    %v62 = vld [vmem:[%s0 + $0x50] sm:$0xff]
    %v63 = vld [vmem:[%s0 + $0x58] sm:$0xff]
    %v64 = vld [vmem:[%s0 + $0x60] sm:$0xff]
    %v65 = vld [vmem:[%s0 + $0x68] sm:$0xff]
    %v66 = vld [vmem:[%s0 + $0x70] sm:$0xff]
    %v67 = vld [vmem:[%s0 + $0x78] sm:$0xff]
    %v68 = vld [vmem:[%s2] sm:$0xff]
    %v69 = vld [vmem:[%s2 + $0x8] sm:$0xff]
    %v70 = vld [vmem:[%s2 + $0x10] sm:$0xff]
    %v71 = vld [vmem:[%s2 + $0x18] sm:$0xff]
    %v72 = vld [vmem:[%s3] sm:$0xff]
    %v73 = vld [vmem:[%s3 + $0x8] sm:$0xff]
    %v74 = vld [vmem:[%s3 + $0x10] sm:$0xff]
    %v75 = vld [vmem:[%s3 + $0x18] sm:$0xff]
    %77 = vset.pattern.permute.xlu0 0
    %78 = vperm.xlu0 %77, %v72
    %v79 = vpop.permute.xlu0 %78
    %82 = vset.pattern.permute.xlu0 0
    %83 = vperm.xlu0 %82, %v73
    %v84 = vpop.permute.xlu0 %83
    %87 = vset.pattern.permute.xlu0 0
    %88 = vperm.xlu0 %87, %v74
    %v89 = vpop.permute.xlu0 %88
    %92 = vset.pattern.permute.xlu0 0
    %93 = vperm.xlu0 %92, %v75
    %v94 = vpop.permute.xlu0 %93
    %vm96 = vcmask 130048
    %v98 = vsel %vm96, %v68, 0
    %v101 = vsel %vm96, %v69, 0
    %v104 = vsel %vm96, %v70, 0
    %v107 = vsel %vm96, %v71, 0
    %v110 = vsel %vm96, %v52, 0
    %v113 = vsel %vm96, %v53, 0
    %v116 = vsel %vm96, %v54, 0
    %v119 = vsel %vm96, %v55, 0
    %v122 = vsel %vm96, %v56, 0
    %v125 = vsel %vm96, %v57, 0
    %v128 = vsel %vm96, %v58, 0
    %v131 = vsel %vm96, %v59, 0
    %v134 = vsel %vm96, %v60, 0
    %v137 = vsel %vm96, %v61, 0
    %v140 = vsel %vm96, %v62, 0
    %v143 = vsel %vm96, %v63, 0
    %v146 = vsel %vm96, %v64, 0
    %v149 = vsel %vm96, %v65, 0
    %v152 = vsel %vm96, %v66, 0
    %v155 = vsel %vm96, %v67, 0
    %157 = vmatprep.subr.mxu0 0.0
    %158 = vmatpush1.xpose.msra.mxu0 %v110
    %159 = vmatprep.subr.mxu0 0.0
    %160 = vmatpush1.xpose.msra.mxu0 %v113
    %161 = vmatprep.subr.mxu0 0.0
    %162 = vmatpush1.xpose.msra.mxu0 %v116
    %163 = vmatprep.subr.mxu0 0.0
    %164 = vmatpush1.xpose.msra.mxu0 %v119
    %165 = vmatprep.subr.mxu0 0.0
    %166 = vmatpush1.xpose.msra.mxu0 %v122
    %167 = vmatprep.subr.mxu0 0.0
    %168 = vmatpush1.xpose.msra.mxu0 %v125
    %169 = vmatprep.subr.mxu0 0.0
    %170 = vmatpush1.xpose.msra.mxu0 %v128
    %171 = vmatprep.subr.mxu0 0.0
    %172 = vmatpush1.xpose.msra.mxu0 %v131
    %173 = vmatprep.subr.mxu0 0.0
    %174 = vmatpush1.xpose.msra.mxu0 %v134
    %175 = vmatprep.subr.mxu0 0.0
    %176 = vmatpush1.xpose.msra.mxu0 %v137
    %177 = vmatprep.subr.mxu0 0.0
    %178 = vmatpush1.xpose.msra.mxu0 %v140
    %179 = vmatprep.subr.mxu0 0.0
    %180 = vmatpush1.xpose.msra.mxu0 %v143
    %181 = vmatprep.subr.mxu0 0.0
    %182 = vmatpush1.xpose.msra.mxu0 %v146
    %183 = vmatprep.subr.mxu0 0.0
    %184 = vmatpush1.xpose.msra.mxu0 %v149
    %185 = vmatprep.subr.mxu0 0.0
    %186 = vmatpush1.xpose.msra.mxu0 %v152
    %187 = vmatprep.subr.mxu0 0.0
    %188 = vmatpush1.xpose.msra.mxu0 %v155
    %189 = vmatprep.subr.mxu0 0.0
    %190 = vmatpush1.xpose.msra.mxu0 0.0
    %191 = vmatprep.subr.mxu0 0.0
    %192 = vmatpush1.xpose.msra.mxu0 0.0
    %193 = vmatprep.subr.mxu0 0.0
    %194 = vmatpush1.xpose.msra.mxu0 0.0
    %195 = vmatprep.subr.mxu0 0.0
    %196 = vmatpush1.xpose.msra.mxu0 0.0
    %197 = vmatprep.subr.mxu0 0.0
    %198 = vmatpush1.xpose.msra.mxu0 0.0
    %199 = vmatprep.subr.mxu0 0.0
    %200 = vmatpush1.xpose.msra.mxu0 0.0
    %201 = vmatprep.subr.mxu0 0.0
    %202 = vmatpush1.xpose.msra.mxu0 0.0
    %203 = vmatprep.subr.mxu0 0.0
    %204 = vmatpush1.xpose.msra.mxu0 0.0
    %205 = vmatprep.subr.mxu0 0.0
    %206 = vmatpush1.xpose.msra.mxu0 0.0
    %207 = vmatprep.subr.mxu0 0.0
    %208 = vmatpush1.xpose.msra.mxu0 0.0
    %209 = vmatprep.subr.mxu0 0.0
    %210 = vmatpush1.xpose.msra.mxu0 0.0
    %211 = vmatprep.subr.mxu0 0.0
    %212 = vmatpush1.xpose.msra.mxu0 0.0
    %213 = vmatprep.subr.mxu0 0.0
    %214 = vmatpush1.xpose.msra.mxu0 0.0
    %215 = vmatprep.subr.mxu0 0.0
    %216 = vmatpush1.xpose.msra.mxu0 0.0
    %217 = vmatprep.subr.mxu0 0.0
    %218 = vmatpush1.xpose.msra.mxu0 0.0
    %219 = vmatprep.subr.mxu0 0.0
    %220 = vmatpush1.xpose.msra.mxu0 0.0
    %221 = vmatprep.mubr.f32.mxu0 0.0
    %222 = vmatmul.mubr.f32.gmra.mrb[0].mxu0 %v98
    %v223 = vpop.f32.mrb[0].mxu0
    %v224 = vadd.f32 %v79, %v223
    %v225 = vpop.f32.mrb[0].mxu0
    %226 = vmatprep.mubr.f32.mxu0 0.0
    %227 = vmatmul.mubr.f32.gmra.mrb[0].mxu0 %v101
    %v228 = vpop.f32.mrb[0].mxu0
    %v229 = vadd.f32 %v84, %v228
    %v230 = vpop.f32.mrb[0].mxu0
    %231 = vmatprep.mubr.f32.mxu0 0.0
    %232 = vmatmul.mubr.f32.gmra.mrb[0].mxu0 %v104
    %v233 = vpop.f32.mrb[0].mxu0
    %v234 = vadd.f32 %v89, %v233
    %v235 = vpop.f32.mrb[0].mxu0
    %236 = vmatprep.mubr.f32.mxu0 0.0
    %237 = vmatmul.mubr.f32.gmra.mrb[0].mxu0 %v107
    %v238 = vpop.f32.mrb[0].mxu0
    %v239 = vadd.f32 %v94, %v238
    %v240 = vpop.f32.mrb[0].mxu0
    %241 = vdwg.mxu0
    %v242 = vmax.f32 %v224, 0.0
    %v243 = vmax.f32 %v229, 0.0
    %v244 = vmax.f32 %v234, 0.0
    %v245 = vmax.f32 %v239, 0.0
    %v246 = vld [vmem:[%s4] sm:$0xff]
    %v247 = vld [vmem:[%s4 + $0x8] sm:$0xff]
    %v248 = vld [vmem:[%s4 + $0x10] sm:$0xff]
    %v249 = vld [vmem:[%s4 + $0x18] sm:$0xff]
    %v250 = vld [vmem:[%s5] sm:$0xff]
    %v251 = vld [vmem:[%s5 + $0x8] sm:$0xff]
    %v252 = vld [vmem:[%s5 + $0x10] sm:$0xff]
    %v253 = vld [vmem:[%s5 + $0x18] sm:$0xff]
    %255 = vset.pattern.permute.xlu0 0
    %256 = vperm.xlu0 %255, %v250
    %v257 = vpop.permute.xlu0 %256
    %260 = vset.pattern.permute.xlu0 0
    %261 = vperm.xlu0 %260, %v251
    %v262 = vpop.permute.xlu0 %261
    %265 = vset.pattern.permute.xlu0 0
    %266 = vperm.xlu0 %265, %v252
    %v267 = vpop.permute.xlu0 %266
    %270 = vset.pattern.permute.xlu0 0
    %271 = vperm.xlu0 %270, %v253
    %v272 = vpop.permute.xlu0 %271
    %vm274 = vcmask 261120
    %v276 = vsel %vm274, %v246, 0
    %v279 = vsel %vm274, %v247, 0
    %v282 = vsel %vm274, %v248, 0
    %v285 = vsel %vm274, %v249, 0
    %287 = vmatprep.subr.mxu0 0.0
    %288 = vmatpush1.msra.mxu0 %v242
    %289 = vmatprep.subr.mxu0 0.0
    %290 = vmatpush1.msra.mxu0 %v243
    %291 = vmatprep.subr.mxu0 0.0
    %292 = vmatpush1.msra.mxu0 %v244
    %293 = vmatprep.subr.mxu0 0.0
    %294 = vmatpush1.msra.mxu0 %v245
    %295 = vmatprep.subr.mxu0 0.0
    %296 = vmatpush1.msra.mxu0 0.0
    %297 = vmatprep.subr.mxu0 0.0
    %298 = vmatpush1.msra.mxu0 0.0
    %299 = vmatprep.subr.mxu0 0.0
    %300 = vmatpush1.msra.mxu0 0.0
    %301 = vmatprep.subr.mxu0 0.0
    %302 = vmatpush1.msra.mxu0 0.0
    %303 = vmatprep.subr.mxu0 0.0
    %304 = vmatpush1.msra.mxu0 0.0
    %305 = vmatprep.subr.mxu0 0.0
    %306 = vmatpush1.msra.mxu0 0.0
    %307 = vmatprep.subr.mxu0 0.0
    %308 = vmatpush1.msra.mxu0 0.0
    %309 = vmatprep.subr.mxu0 0.0
    %310 = vmatpush1.msra.mxu0 0.0
    %311 = vmatprep.subr.mxu0 0.0
    %312 = vmatpush1.msra.mxu0 0.0
    %313 = vmatprep.subr.mxu0 0.0
    %314 = vmatpush1.msra.mxu0 0.0
    %315 = vmatprep.subr.mxu0 0.0
    %316 = vmatpush1.msra.mxu0 0.0
    %317 = vmatprep.subr.mxu0 0.0
    %318 = vmatpush1.msra.mxu0 0.0
    %319 = vmatprep.subr.mxu0 0.0
    %320 = vmatpush1.msra.mxu0 0.0
    %321 = vmatprep.subr.mxu0 0.0
    %322 = vmatpush1.msra.mxu0 0.0
    %323 = vmatprep.subr.mxu0 0.0
    %324 = vmatpush1.msra.mxu0 0.0
    %325 = vmatprep.subr.mxu0 0.0
    %326 = vmatpush1.msra.mxu0 0.0
    %327 = vmatprep.subr.mxu0 0.0
    %328 = vmatpush1.msra.mxu0 0.0
    %329 = vmatprep.subr.mxu0 0.0
    %330 = vmatpush1.msra.mxu0 0.0
    %331 = vmatprep.subr.mxu0 0.0
    %332 = vmatpush1.msra.mxu0 0.0
    %333 = vmatprep.subr.mxu0 0.0
    %334 = vmatpush1.msra.mxu0 0.0
    %335 = vmatprep.subr.mxu0 0.0
    %336 = vmatpush1.msra.mxu0 0.0
    %337 = vmatprep.subr.mxu0 0.0
    %338 = vmatpush1.msra.mxu0 0.0
    %339 = vmatprep.subr.mxu0 0.0
    %340 = vmatpush1.msra.mxu0 0.0
    %341 = vmatprep.subr.mxu0 0.0
    %342 = vmatpush1.msra.mxu0 0.0
    %343 = vmatprep.subr.mxu0 0.0
    %344 = vmatpush1.msra.mxu0 0.0
    %345 = vmatprep.subr.mxu0 0.0
    %346 = vmatpush1.msra.mxu0 0.0
    %347 = vmatprep.subr.mxu0 0.0
    %348 = vmatpush1.msra.mxu0 0.0
    %349 = vmatprep.subr.mxu0 0.0
    %350 = vmatpush1.msra.mxu0 0.0
    %351 = vmatprep.mubr.f32.mxu0 0.0
    %352 = vmatmul.mubr.f32.gmra.mrb[0].mxu0 %v276
    %v353 = vpop.f32.mrb[0].mxu0
    %v354 = vadd.f32 %v257, %v353
    %v355 = vpop.f32.mrb[0].mxu0
    %356 = vmatprep.mubr.f32.mxu0 0.0
    %357 = vmatmul.mubr.f32.gmra.mrb[0].mxu0 %v279
    %v358 = vpop.f32.mrb[0].mxu0
    %v359 = vadd.f32 %v262, %v358
    %v360 = vpop.f32.mrb[0].mxu0
    %361 = vmatprep.mubr.f32.mxu0 0.0
    %362 = vmatmul.mubr.f32.gmra.mrb[0].mxu0 %v282
    %v363 = vpop.f32.mrb[0].mxu0
    %v364 = vadd.f32 %v267, %v363
    %v365 = vpop.f32.mrb[0].mxu0
    %366 = vmatprep.mubr.f32.mxu0 0.0
    %367 = vmatmul.mubr.f32.gmra.mrb[0].mxu0 %v285
    %v368 = vpop.f32.mrb[0].mxu0
    %v369 = vadd.f32 %v272, %v368
    %v370 = vpop.f32.mrb[0].mxu0
    %371 = vdwg.mxu0
    %v372 = vmax.f32 %v354, 0.0
    %v373 = vmax.f32 %v359, 0.0
    %v374 = vmax.f32 %v364, 0.0
    %v375 = vmax.f32 %v369, 0.0
    %v376 = vld [vmem:[%s6] sm:$0xff]
    %v377 = vld [vmem:[%s6 + $0x8] sm:$0xff]
    %v378 = vld [vmem:[%s6 + $0x10] sm:$0xff]
    %v379 = vld [vmem:[%s6 + $0x18] sm:$0xff]
    %v380 = vld [vmem:[%s6 + $0x20] sm:$0xff]
    %v381 = vld [vmem:[%s6 + $0x28] sm:$0xff]
    %v382 = vld [vmem:[%s6 + $0x30] sm:$0xff]
    %v383 = vld [vmem:[%s6 + $0x38] sm:$0xff]
    %v384 = vld [vmem:[%s7] sm:$0xff]
    %v385 = vld [vmem:[%s7 + $0x8] sm:$0xff]
    %v386 = vld [vmem:[%s7 + $0x10] sm:$0xff]
    %v387 = vld [vmem:[%s7 + $0x18] sm:$0xff]
    %v388 = vld [vmem:[%s7 + $0x20] sm:$0xff]
    %v389 = vld [vmem:[%s7 + $0x28] sm:$0xff]
    %v390 = vld [vmem:[%s7 + $0x30] sm:$0xff]
    %v391 = vld [vmem:[%s7 + $0x38] sm:$0xff]
    %393 = vset.pattern.permute.xlu0 0
    %394 = vperm.xlu0 %393, %v384
    %v395 = vpop.permute.xlu0 %394
    %398 = vset.pattern.permute.xlu0 0
    %399 = vperm.xlu0 %398, %v385
    %v400 = vpop.permute.xlu0 %399
    %403 = vset.pattern.permute.xlu0 0
    %404 = vperm.xlu0 %403, %v386
    %v405 = vpop.permute.xlu0 %404
    %408 = vset.pattern.permute.xlu0 0
    %409 = vperm.xlu0 %408, %v387
    %v410 = vpop.permute.xlu0 %409
    %413 = vset.pattern.permute.xlu0 0
    %414 = vperm.xlu0 %413, %v388
    %v415 = vpop.permute.xlu0 %414
    %418 = vset.pattern.permute.xlu0 0
    %419 = vperm.xlu0 %418, %v389
    %v420 = vpop.permute.xlu0 %419
    %423 = vset.pattern.permute.xlu0 0
    %424 = vperm.xlu0 %423, %v390
    %v425 = vpop.permute.xlu0 %424
    %428 = vset.pattern.permute.xlu0 0
    %429 = vperm.xlu0 %428, %v391
    %v430 = vpop.permute.xlu0 %429
    %v433 = vsel %vm274, %v376, 0
    %v436 = vsel %vm274, %v377, 0
    %v439 = vsel %vm274, %v378, 0
    %v442 = vsel %vm274, %v379, 0
    %v445 = vsel %vm274, %v380, 0
    %v448 = vsel %vm274, %v381, 0
    %v451 = vsel %vm274, %v382, 0
    %v454 = vsel %vm274, %v383, 0
    %456 = vmatprep.subr.mxu0 0.0
    %457 = vmatpush1.msra.mxu0 %v372
    %458 = vmatprep.subr.mxu0 0.0
    %459 = vmatpush1.msra.mxu0 %v373
    %460 = vmatprep.subr.mxu0 0.0
    %461 = vmatpush1.msra.mxu0 %v374
    %462 = vmatprep.subr.mxu0 0.0
    %463 = vmatpush1.msra.mxu0 %v375
    %464 = vmatprep.subr.mxu0 0.0
    %465 = vmatpush1.msra.mxu0 0.0
    %466 = vmatprep.subr.mxu0 0.0
    %467 = vmatpush1.msra.mxu0 0.0
    %468 = vmatprep.subr.mxu0 0.0
    %469 = vmatpush1.msra.mxu0 0.0
    %470 = vmatprep.subr.mxu0 0.0
    %471 = vmatpush1.msra.mxu0 0.0
    %472 = vmatprep.subr.mxu0 0.0
    %473 = vmatpush1.msra.mxu0 0.0
    %474 = vmatprep.subr.mxu0 0.0
    %475 = vmatpush1.msra.mxu0 0.0
    %476 = vmatprep.subr.mxu0 0.0
    %477 = vmatpush1.msra.mxu0 0.0
    %478 = vmatprep.subr.mxu0 0.0
    %479 = vmatpush1.msra.mxu0 0.0
    %480 = vmatprep.subr.mxu0 0.0
    %481 = vmatpush1.msra.mxu0 0.0
    %482 = vmatprep.subr.mxu0 0.0
    %483 = vmatpush1.msra.mxu0 0.0
    %484 = vmatprep.subr.mxu0 0.0
    %485 = vmatpush1.msra.mxu0 0.0
    %486 = vmatprep.subr.mxu0 0.0
    %487 = vmatpush1.msra.mxu0 0.0
    %488 = vmatprep.subr.mxu0 0.0
    %489 = vmatpush1.msra.mxu0 0.0
    %490 = vmatprep.subr.mxu0 0.0
    %491 = vmatpush1.msra.mxu0 0.0
    %492 = vmatprep.subr.mxu0 0.0
    %493 = vmatpush1.msra.mxu0 0.0
    %494 = vmatprep.subr.mxu0 0.0
    %495 = vmatpush1.msra.mxu0 0.0
    %496 = vmatprep.subr.mxu0 0.0
    %497 = vmatpush1.msra.mxu0 0.0
    %498 = vmatprep.subr.mxu0 0.0
    %499 = vmatpush1.msra.mxu0 0.0
    %500 = vmatprep.subr.mxu0 0.0
    %501 = vmatpush1.msra.mxu0 0.0
    %502 = vmatprep.subr.mxu0 0.0
    %503 = vmatpush1.msra.mxu0 0.0
    %504 = vmatprep.subr.mxu0 0.0
    %505 = vmatpush1.msra.mxu0 0.0
    %506 = vmatprep.subr.mxu0 0.0
    %507 = vmatpush1.msra.mxu0 0.0
    %508 = vmatprep.subr.mxu0 0.0
    %509 = vmatpush1.msra.mxu0 0.0
    %510 = vmatprep.subr.mxu0 0.0
    %511 = vmatpush1.msra.mxu0 0.0
    %512 = vmatprep.subr.mxu0 0.0
    %513 = vmatpush1.msra.mxu0 0.0
    %514 = vmatprep.subr.mxu0 0.0
    %515 = vmatpush1.msra.mxu0 0.0
    %516 = vmatprep.subr.mxu0 0.0
    %517 = vmatpush1.msra.mxu0 0.0
    %518 = vmatprep.subr.mxu0 0.0
    %519 = vmatpush1.msra.mxu0 0.0
    %520 = vmatprep.mubr.f32.mxu0 0.0
    %521 = vmatmul.mubr.f32.gmra.mrb[0].mxu0 %v433
    %v522 = vpop.f32.mrb[0].mxu0
    %v523 = vadd.f32 %v395, %v522
    %v524 = vpop.f32.mrb[0].mxu0
    %525 = vmatprep.mubr.f32.mxu0 0.0
    %526 = vmatmul.mubr.f32.gmra.mrb[0].mxu0 %v436
    %v527 = vpop.f32.mrb[0].mxu0
    %v528 = vadd.f32 %v400, %v527
    %v529 = vpop.f32.mrb[0].mxu0
    %530 = vmatprep.mubr.f32.mxu0 0.0
    %531 = vmatmul.mubr.f32.gmra.mrb[0].mxu0 %v439
    %v532 = vpop.f32.mrb[0].mxu0
    %v533 = vadd.f32 %v405, %v532
    %v534 = vpop.f32.mrb[0].mxu0
    %535 = vmatprep.mubr.f32.mxu0 0.0
    %536 = vmatmul.mubr.f32.gmra.mrb[0].mxu0 %v442
    %v537 = vpop.f32.mrb[0].mxu0
    %v538 = vadd.f32 %v410, %v537
    %v539 = vpop.f32.mrb[0].mxu0
    %540 = vmatprep.mubr.f32.mxu0 0.0
    %541 = vmatmul.mubr.f32.gmra.mrb[0].mxu0 %v445
    %v542 = vpop.f32.mrb[0].mxu0
    %v543 = vadd.f32 %v415, %v542
    %v544 = vpop.f32.mrb[0].mxu0
    %545 = vmatprep.mubr.f32.mxu0 0.0
    %546 = vmatmul.mubr.f32.gmra.mrb[0].mxu0 %v448
    %v547 = vpop.f32.mrb[0].mxu0
    %v548 = vadd.f32 %v420, %v547
    %v549 = vpop.f32.mrb[0].mxu0
    %550 = vmatprep.mubr.f32.mxu0 0.0
    %551 = vmatmul.mubr.f32.gmra.mrb[0].mxu0 %v451
    %v552 = vpop.f32.mrb[0].mxu0
    %v553 = vadd.f32 %v425, %v552
    %v554 = vpop.f32.mrb[0].mxu0
    %555 = vmatprep.mubr.f32.mxu0 0.0
    %556 = vmatmul.mubr.f32.gmra.mrb[0].mxu0 %v454
    %v557 = vpop.f32.mrb[0].mxu0
    %v558 = vadd.f32 %v430, %v557
    %v559 = vpop.f32.mrb[0].mxu0
    %560 = vdwg.mxu0
    %v561 = vld [vmem:[%s1] sm:$0xff]
    %v562 = vld [vmem:[%s1 + $0x8] sm:$0xff]
    %v563 = vld [vmem:[%s1 + $0x10] sm:$0xff]
    %v564 = vld [vmem:[%s1 + $0x18] sm:$0xff]
    %v565 = vld [vmem:[%s1 + $0x20] sm:$0xff]
    %v566 = vld [vmem:[%s1 + $0x28] sm:$0xff]
    %v567 = vld [vmem:[%s1 + $0x30] sm:$0xff]
    %v568 = vld [vmem:[%s1 + $0x38] sm:$0xff]
    %v569 = vld [vmem:[%s1 + $0x40] sm:$0xff]
    %v570 = vld [vmem:[%s1 + $0x48] sm:$0xff]
    %v571 = vld [vmem:[%s1 + $0x50] sm:$0xff]
    %v572 = vld [vmem:[%s1 + $0x58] sm:$0xff]
    %v573 = vld [vmem:[%s1 + $0x60] sm:$0xff]
    %v574 = vld [vmem:[%s1 + $0x68] sm:$0xff]
    %v575 = vld [vmem:[%s1 + $0x70] sm:$0xff]
    %v576 = vld [vmem:[%s1 + $0x78] sm:$0xff]
    %v577 = vld [vmem:[%s8] sm:$0xff]
    %v578 = vld [vmem:[%s8 + $0x8] sm:$0xff]
    %v579 = vld [vmem:[%s8 + $0x10] sm:$0xff]
    %v580 = vld [vmem:[%s8 + $0x18] sm:$0xff]
    %v581 = vld [vmem:[%s9] sm:$0xff]
    %v582 = vld [vmem:[%s9 + $0x8] sm:$0xff]
    %v583 = vld [vmem:[%s9 + $0x10] sm:$0xff]
    %v584 = vld [vmem:[%s9 + $0x18] sm:$0xff]
    %586 = vset.pattern.permute.xlu0 0
    %587 = vperm.xlu0 %586, %v581
    %v588 = vpop.permute.xlu0 %587
    %591 = vset.pattern.permute.xlu0 0
    %592 = vperm.xlu0 %591, %v582
    %v593 = vpop.permute.xlu0 %592
    %596 = vset.pattern.permute.xlu0 0
    %597 = vperm.xlu0 %596, %v583
    %v598 = vpop.permute.xlu0 %597
    %601 = vset.pattern.permute.xlu0 0
    %602 = vperm.xlu0 %601, %v584
    %v603 = vpop.permute.xlu0 %602
    %v606 = vsel %vm96, %v577, 0
    %v609 = vsel %vm96, %v578, 0
    %v612 = vsel %vm96, %v579, 0
    %v615 = vsel %vm96, %v580, 0
    %v618 = vsel %vm96, %v561, 0
    %v621 = vsel %vm96, %v562, 0
    %v624 = vsel %vm96, %v563, 0
    %v627 = vsel %vm96, %v564, 0
    %v630 = vsel %vm96, %v565, 0
    %v633 = vsel %vm96, %v566, 0
    %v636 = vsel %vm96, %v567, 0
    %v639 = vsel %vm96, %v568, 0
    %v642 = vsel %vm96, %v569, 0
    %v645 = vsel %vm96, %v570, 0
    %v648 = vsel %vm96, %v571, 0
    %v651 = vsel %vm96, %v572, 0
    %v654 = vsel %vm96, %v573, 0
    %v657 = vsel %vm96, %v574, 0
    %v660 = vsel %vm96, %v575, 0
    %v663 = vsel %vm96, %v576, 0
    %665 = vmatprep.subr.mxu0 0.0
    %666 = vmatpush1.xpose.msra.mxu0 %v618
    %667 = vmatprep.subr.mxu0 0.0
    %668 = vmatpush1.xpose.msra.mxu0 %v621
    %669 = vmatprep.subr.mxu0 0.0
    %670 = vmatpush1.xpose.msra.mxu0 %v624
    %671 = vmatprep.subr.mxu0 0.0
    %672 = vmatpush1.xpose.msra.mxu0 %v627
    %673 = vmatprep.subr.mxu0 0.0
    %674 = vmatpush1.xpose.msra.mxu0 %v630
    %675 = vmatprep.subr.mxu0 0.0
    %676 = vmatpush1.xpose.msra.mxu0 %v633
    %677 = vmatprep.subr.mxu0 0.0
    %678 = vmatpush1.xpose.msra.mxu0 %v636
    %679 = vmatprep.subr.mxu0 0.0
    %680 = vmatpush1.xpose.msra.mxu0 %v639
    %681 = vmatprep.subr.mxu0 0.0
    %682 = vmatpush1.xpose.msra.mxu0 %v642
    %683 = vmatprep.subr.mxu0 0.0
    %684 = vmatpush1.xpose.msra.mxu0 %v645
    %685 = vmatprep.subr.mxu0 0.0
    %686 = vmatpush1.xpose.msra.mxu0 %v648
    %687 = vmatprep.subr.mxu0 0.0
    %688 = vmatpush1.xpose.msra.mxu0 %v651
    %689 = vmatprep.subr.mxu0 0.0
    %690 = vmatpush1.xpose.msra.mxu0 %v654
    %691 = vmatprep.subr.mxu0 0.0
    %692 = vmatpush1.xpose.msra.mxu0 %v657
    %693 = vmatprep.subr.mxu0 0.0
    %694 = vmatpush1.xpose.msra.mxu0 %v660
    %695 = vmatprep.subr.mxu0 0.0
    %696 = vmatpush1.xpose.msra.mxu0 %v663
    %697 = vmatprep.subr.mxu0 0.0
    %698 = vmatpush1.xpose.msra.mxu0 0.0
    %699 = vmatprep.subr.mxu0 0.0
    %700 = vmatpush1.xpose.msra.mxu0 0.0
    %701 = vmatprep.subr.mxu0 0.0
    %702 = vmatpush1.xpose.msra.mxu0 0.0
    %703 = vmatprep.subr.mxu0 0.0
    %704 = vmatpush1.xpose.msra.mxu0 0.0
    %705 = vmatprep.subr.mxu0 0.0
    %706 = vmatpush1.xpose.msra.mxu0 0.0
    %707 = vmatprep.subr.mxu0 0.0
    %708 = vmatpush1.xpose.msra.mxu0 0.0
    %709 = vmatprep.subr.mxu0 0.0
    %710 = vmatpush1.xpose.msra.mxu0 0.0
    %711 = vmatprep.subr.mxu0 0.0
    %712 = vmatpush1.xpose.msra.mxu0 0.0
    %713 = vmatprep.subr.mxu0 0.0
    %714 = vmatpush1.xpose.msra.mxu0 0.0
    %715 = vmatprep.subr.mxu0 0.0
    %716 = vmatpush1.xpose.msra.mxu0 0.0
    %717 = vmatprep.subr.mxu0 0.0
    %718 = vmatpush1.xpose.msra.mxu0 0.0
    %719 = vmatprep.subr.mxu0 0.0
    %720 = vmatpush1.xpose.msra.mxu0 0.0
    %721 = vmatprep.subr.mxu0 0.0
    %722 = vmatpush1.xpose.msra.mxu0 0.0
    %723 = vmatprep.subr.mxu0 0.0
    %724 = vmatpush1.xpose.msra.mxu0 0.0
    %725 = vmatprep.subr.mxu0 0.0
    %726 = vmatpush1.xpose.msra.mxu0 0.0
    %727 = vmatprep.subr.mxu0 0.0
    %728 = vmatpush1.xpose.msra.mxu0 0.0
    %729 = vmatprep.mubr.f32.mxu0 0.0
    %730 = vmatmul.mubr.f32.gmra.mrb[0].mxu0 %v606
    %v731 = vpop.f32.mrb[0].mxu0
    %v732 = vadd.f32 %v588, %v731
    %v733 = vpop.f32.mrb[0].mxu0
    %734 = vmatprep.mubr.f32.mxu0 0.0
    %735 = vmatmul.mubr.f32.gmra.mrb[0].mxu0 %v609
    %v736 = vpop.f32.mrb[0].mxu0
    %v737 = vadd.f32 %v593, %v736
    %v738 = vpop.f32.mrb[0].mxu0
    %739 = vmatprep.mubr.f32.mxu0 0.0
    %740 = vmatmul.mubr.f32.gmra.mrb[0].mxu0 %v612
    %v741 = vpop.f32.mrb[0].mxu0
    %v742 = vadd.f32 %v598, %v741
    %v743 = vpop.f32.mrb[0].mxu0
    %744 = vmatprep.mubr.f32.mxu0 0.0
    %745 = vmatmul.mubr.f32.gmra.mrb[0].mxu0 %v615
    %v746 = vpop.f32.mrb[0].mxu0
    %v747 = vadd.f32 %v603, %v746
    %v748 = vpop.f32.mrb[0].mxu0
    %749 = vdwg.mxu0
    %v750 = vmax.f32 %v732, 0.0
    %v751 = vmax.f32 %v737, 0.0
    %v752 = vmax.f32 %v742, 0.0
    %v753 = vmax.f32 %v747, 0.0
    %v754 = vld [vmem:[%s10] sm:$0xff]
    %v755 = vld [vmem:[%s10 + $0x8] sm:$0xff]
    %v756 = vld [vmem:[%s10 + $0x10] sm:$0xff]
    %v757 = vld [vmem:[%s10 + $0x18] sm:$0xff]
    %v758 = vld [vmem:[%s11] sm:$0xff]
    %v759 = vld [vmem:[%s11 + $0x8] sm:$0xff]
    %v760 = vld [vmem:[%s11 + $0x10] sm:$0xff]
    %v761 = vld [vmem:[%s11 + $0x18] sm:$0xff]
    %763 = vset.pattern.permute.xlu0 0
    %764 = vperm.xlu0 %763, %v758
    %v765 = vpop.permute.xlu0 %764
    %768 = vset.pattern.permute.xlu0 0
    %769 = vperm.xlu0 %768, %v759
    %v770 = vpop.permute.xlu0 %769
    %773 = vset.pattern.permute.xlu0 0
    %774 = vperm.xlu0 %773, %v760
    %v775 = vpop.permute.xlu0 %774
    %778 = vset.pattern.permute.xlu0 0
    %779 = vperm.xlu0 %778, %v761
    %v780 = vpop.permute.xlu0 %779
    %v783 = vsel %vm274, %v754, 0
    %v786 = vsel %vm274, %v755, 0
    %v789 = vsel %vm274, %v756, 0
    %v792 = vsel %vm274, %v757, 0
    %794 = vmatprep.subr.mxu0 0.0
    %795 = vmatpush1.msra.mxu0 %v750
    %796 = vmatprep.subr.mxu0 0.0
    %797 = vmatpush1.msra.mxu0 %v751
    %798 = vmatprep.subr.mxu0 0.0
    %799 = vmatpush1.msra.mxu0 %v752
    %800 = vmatprep.subr.mxu0 0.0
    %801 = vmatpush1.msra.mxu0 %v753
    %802 = vmatprep.subr.mxu0 0.0
    %803 = vmatpush1.msra.mxu0 0.0
    %804 = vmatprep.subr.mxu0 0.0
    %805 = vmatpush1.msra.mxu0 0.0
    %806 = vmatprep.subr.mxu0 0.0
    %807 = vmatpush1.msra.mxu0 0.0
    %808 = vmatprep.subr.mxu0 0.0
    %809 = vmatpush1.msra.mxu0 0.0
    %810 = vmatprep.subr.mxu0 0.0
    %811 = vmatpush1.msra.mxu0 0.0
    %812 = vmatprep.subr.mxu0 0.0
    %813 = vmatpush1.msra.mxu0 0.0
    %814 = vmatprep.subr.mxu0 0.0
    %815 = vmatpush1.msra.mxu0 0.0
    %816 = vmatprep.subr.mxu0 0.0
    %817 = vmatpush1.msra.mxu0 0.0
    %818 = vmatprep.subr.mxu0 0.0
    %819 = vmatpush1.msra.mxu0 0.0
    %820 = vmatprep.subr.mxu0 0.0
    %821 = vmatpush1.msra.mxu0 0.0
    %822 = vmatprep.subr.mxu0 0.0
    %823 = vmatpush1.msra.mxu0 0.0
    %824 = vmatprep.subr.mxu0 0.0
    %825 = vmatpush1.msra.mxu0 0.0
    %826 = vmatprep.subr.mxu0 0.0
    %827 = vmatpush1.msra.mxu0 0.0
    %828 = vmatprep.subr.mxu0 0.0
    %829 = vmatpush1.msra.mxu0 0.0
    %830 = vmatprep.subr.mxu0 0.0
    %831 = vmatpush1.msra.mxu0 0.0
    %832 = vmatprep.subr.mxu0 0.0
    %833 = vmatpush1.msra.mxu0 0.0
    %834 = vmatprep.subr.mxu0 0.0
    %835 = vmatpush1.msra.mxu0 0.0
    %836 = vmatprep.subr.mxu0 0.0
    %837 = vmatpush1.msra.mxu0 0.0
    %838 = vmatprep.subr.mxu0 0.0
    %839 = vmatpush1.msra.mxu0 0.0
    %840 = vmatprep.subr.mxu0 0.0
    %841 = vmatpush1.msra.mxu0 0.0
    %842 = vmatprep.subr.mxu0 0.0
    %843 = vmatpush1.msra.mxu0 0.0
    %844 = vmatprep.subr.mxu0 0.0
    %845 = vmatpush1.msra.mxu0 0.0
    %846 = vmatprep.subr.mxu0 0.0
    %847 = vmatpush1.msra.mxu0 0.0
    %848 = vmatprep.subr.mxu0 0.0
    %849 = vmatpush1.msra.mxu0 0.0
    %850 = vmatprep.subr.mxu0 0.0
    %851 = vmatpush1.msra.mxu0 0.0
    %852 = vmatprep.subr.mxu0 0.0
    %853 = vmatpush1.msra.mxu0 0.0
    %854 = vmatprep.subr.mxu0 0.0
    %855 = vmatpush1.msra.mxu0 0.0
    %856 = vmatprep.subr.mxu0 0.0
    %857 = vmatpush1.msra.mxu0 0.0
    %858 = vmatprep.mubr.f32.mxu0 0.0
    %859 = vmatmul.mubr.f32.gmra.mrb[0].mxu0 %v783
    %v860 = vpop.f32.mrb[0].mxu0
    %v861 = vadd.f32 %v765, %v860
    %v862 = vpop.f32.mrb[0].mxu0
    %863 = vmatprep.mubr.f32.mxu0 0.0
    %864 = vmatmul.mubr.f32.gmra.mrb[0].mxu0 %v786
    %v865 = vpop.f32.mrb[0].mxu0
    %v866 = vadd.f32 %v770, %v865
    %v867 = vpop.f32.mrb[0].mxu0
    %868 = vmatprep.mubr.f32.mxu0 0.0
    %869 = vmatmul.mubr.f32.gmra.mrb[0].mxu0 %v789
    %v870 = vpop.f32.mrb[0].mxu0
    %v871 = vadd.f32 %v775, %v870
    %v872 = vpop.f32.mrb[0].mxu0
    %873 = vmatprep.mubr.f32.mxu0 0.0
    %874 = vmatmul.mubr.f32.gmra.mrb[0].mxu0 %v792
    %v875 = vpop.f32.mrb[0].mxu0
    %v876 = vadd.f32 %v780, %v875
    %v877 = vpop.f32.mrb[0].mxu0
    %878 = vdwg.mxu0
    %v879 = vmax.f32 %v861, 0.0
    %v880 = vmax.f32 %v866, 0.0
    %v881 = vmax.f32 %v871, 0.0
    %v882 = vmax.f32 %v876, 0.0
    %v883 = vld [vmem:[%s12] sm:$0xff]
    %v884 = vld [vmem:[%s12 + $0x8] sm:$0xff]
    %v885 = vld [vmem:[%s12 + $0x10] sm:$0xff]
    %v886 = vld [vmem:[%s12 + $0x18] sm:$0xff]
    %v887 = vld [vmem:[%s12 + $0x20] sm:$0xff]
    %v888 = vld [vmem:[%s12 + $0x28] sm:$0xff]
    %v889 = vld [vmem:[%s12 + $0x30] sm:$0xff]
    %v890 = vld [vmem:[%s12 + $0x38] sm:$0xff]
    %v891 = vld [vmem:[%s13] sm:$0xff]
    %v892 = vld [vmem:[%s13 + $0x8] sm:$0xff]
    %v893 = vld [vmem:[%s13 + $0x10] sm:$0xff]
    %v894 = vld [vmem:[%s13 + $0x18] sm:$0xff]
    %v895 = vld [vmem:[%s13 + $0x20] sm:$0xff]
    %v896 = vld [vmem:[%s13 + $0x28] sm:$0xff]
    %v897 = vld [vmem:[%s13 + $0x30] sm:$0xff]
    %v898 = vld [vmem:[%s13 + $0x38] sm:$0xff]
    %900 = vset.pattern.permute.xlu0 0
    %901 = vperm.xlu0 %900, %v891
    %v902 = vpop.permute.xlu0 %901
    %905 = vset.pattern.permute.xlu0 0
    %906 = vperm.xlu0 %905, %v892
    %v907 = vpop.permute.xlu0 %906
    %910 = vset.pattern.permute.xlu0 0
    %911 = vperm.xlu0 %910, %v893
    %v912 = vpop.permute.xlu0 %911
    %915 = vset.pattern.permute.xlu0 0
    %916 = vperm.xlu0 %915, %v894
    %v917 = vpop.permute.xlu0 %916
    %920 = vset.pattern.permute.xlu0 0
    %921 = vperm.xlu0 %920, %v895
    %v922 = vpop.permute.xlu0 %921
    %925 = vset.pattern.permute.xlu0 0
    %926 = vperm.xlu0 %925, %v896
    %v927 = vpop.permute.xlu0 %926
    %930 = vset.pattern.permute.xlu0 0
    %931 = vperm.xlu0 %930, %v897
    %v932 = vpop.permute.xlu0 %931
    %935 = vset.pattern.permute.xlu0 0
    %936 = vperm.xlu0 %935, %v898
    %v937 = vpop.permute.xlu0 %936
    %v940 = vsel %vm274, %v883, 0
    %v943 = vsel %vm274, %v884, 0
    %v946 = vsel %vm274, %v885, 0
    %v949 = vsel %vm274, %v886, 0
    %v952 = vsel %vm274, %v887, 0
    %v955 = vsel %vm274, %v888, 0
    %v958 = vsel %vm274, %v889, 0
    %v961 = vsel %vm274, %v890, 0
    %963 = vmatprep.subr.mxu0 0.0
    %964 = vmatpush1.msra.mxu0 %v879
    %965 = vmatprep.subr.mxu0 0.0
    %966 = vmatpush1.msra.mxu0 %v880
    %967 = vmatprep.subr.mxu0 0.0
    %968 = vmatpush1.msra.mxu0 %v881
    %969 = vmatprep.subr.mxu0 0.0
    %970 = vmatpush1.msra.mxu0 %v882
    %971 = vmatprep.subr.mxu0 0.0
    %972 = vmatpush1.msra.mxu0 0.0
    %973 = vmatprep.subr.mxu0 0.0
    %974 = vmatpush1.msra.mxu0 0.0
    %975 = vmatprep.subr.mxu0 0.0
    %976 = vmatpush1.msra.mxu0 0.0
    %977 = vmatprep.subr.mxu0 0.0
    %978 = vmatpush1.msra.mxu0 0.0
    %979 = vmatprep.subr.mxu0 0.0
    %980 = vmatpush1.msra.mxu0 0.0
    %981 = vmatprep.subr.mxu0 0.0
    %982 = vmatpush1.msra.mxu0 0.0
    %983 = vmatprep.subr.mxu0 0.0
    %984 = vmatpush1.msra.mxu0 0.0
    %985 = vmatprep.subr.mxu0 0.0
    %986 = vmatpush1.msra.mxu0 0.0
    %987 = vmatprep.subr.mxu0 0.0
    %988 = vmatpush1.msra.mxu0 0.0
    %989 = vmatprep.subr.mxu0 0.0
    %990 = vmatpush1.msra.mxu0 0.0
    %991 = vmatprep.subr.mxu0 0.0
    %992 = vmatpush1.msra.mxu0 0.0
    %993 = vmatprep.subr.mxu0 0.0
    %994 = vmatpush1.msra.mxu0 0.0
    %995 = vmatprep.subr.mxu0 0.0
    %996 = vmatpush1.msra.mxu0 0.0
    %997 = vmatprep.subr.mxu0 0.0
    %998 = vmatpush1.msra.mxu0 0.0
    %999 = vmatprep.subr.mxu0 0.0
    %1000 = vmatpush1.msra.mxu0 0.0
    %1001 = vmatprep.subr.mxu0 0.0
    %1002 = vmatpush1.msra.mxu0 0.0
    %1003 = vmatprep.subr.mxu0 0.0
    %1004 = vmatpush1.msra.mxu0 0.0
    %1005 = vmatprep.subr.mxu0 0.0
    %1006 = vmatpush1.msra.mxu0 0.0
    %1007 = vmatprep.subr.mxu0 0.0
    %1008 = vmatpush1.msra.mxu0 0.0
    %1009 = vmatprep.subr.mxu0 0.0
    %1010 = vmatpush1.msra.mxu0 0.0
    %1011 = vmatprep.subr.mxu0 0.0
    %1012 = vmatpush1.msra.mxu0 0.0
    %1013 = vmatprep.subr.mxu0 0.0
    %1014 = vmatpush1.msra.mxu0 0.0
    %1015 = vmatprep.subr.mxu0 0.0
    %1016 = vmatpush1.msra.mxu0 0.0
    %1017 = vmatprep.subr.mxu0 0.0
    %1018 = vmatpush1.msra.mxu0 0.0
    %1019 = vmatprep.subr.mxu0 0.0
    %1020 = vmatpush1.msra.mxu0 0.0
    %1021 = vmatprep.subr.mxu0 0.0
    %1022 = vmatpush1.msra.mxu0 0.0
    %1023 = vmatprep.subr.mxu0 0.0
    %1024 = vmatpush1.msra.mxu0 0.0
    %1025 = vmatprep.subr.mxu0 0.0
    %1026 = vmatpush1.msra.mxu0 0.0
    %1027 = vmatprep.mubr.f32.mxu0 0.0
    %1028 = vmatmul.mubr.f32.gmra.mrb[0].mxu0 %v940
    %v1029 = vpop.f32.mrb[0].mxu0
    %v1030 = vadd.f32 %v902, %v1029
    %v1031 = vpop.f32.mrb[0].mxu0
    %1032 = vmatprep.mubr.f32.mxu0 0.0
    %1033 = vmatmul.mubr.f32.gmra.mrb[0].mxu0 %v943
    %v1034 = vpop.f32.mrb[0].mxu0
    %v1035 = vadd.f32 %v907, %v1034
    %v1036 = vpop.f32.mrb[0].mxu0
    %1037 = vmatprep.mubr.f32.mxu0 0.0
    %1038 = vmatmul.mubr.f32.gmra.mrb[0].mxu0 %v946
    %v1039 = vpop.f32.mrb[0].mxu0
    %v1040 = vadd.f32 %v912, %v1039
    %v1041 = vpop.f32.mrb[0].mxu0
    %1042 = vmatprep.mubr.f32.mxu0 0.0
    %1043 = vmatmul.mubr.f32.gmra.mrb[0].mxu0 %v949
    %v1044 = vpop.f32.mrb[0].mxu0
    %v1045 = vadd.f32 %v917, %v1044
    %v1046 = vpop.f32.mrb[0].mxu0
    %1047 = vmatprep.mubr.f32.mxu0 0.0
    %1048 = vmatmul.mubr.f32.gmra.mrb[0].mxu0 %v952
    %v1049 = vpop.f32.mrb[0].mxu0
    %v1050 = vadd.f32 %v922, %v1049
    %v1051 = vpop.f32.mrb[0].mxu0
    %1052 = vmatprep.mubr.f32.mxu0 0.0
    %1053 = vmatmul.mubr.f32.gmra.mrb[0].mxu0 %v955
    %v1054 = vpop.f32.mrb[0].mxu0
    %v1055 = vadd.f32 %v927, %v1054
    %v1056 = vpop.f32.mrb[0].mxu0
    %1057 = vmatprep.mubr.f32.mxu0 0.0
    %1058 = vmatmul.mubr.f32.gmra.mrb[0].mxu0 %v958
    %v1059 = vpop.f32.mrb[0].mxu0
    %v1060 = vadd.f32 %v932, %v1059
    %v1061 = vpop.f32.mrb[0].mxu0
    %1062 = vmatprep.mubr.f32.mxu0 0.0
    %1063 = vmatmul.mubr.f32.gmra.mrb[0].mxu0 %v961
    %v1064 = vpop.f32.mrb[0].mxu0
    %v1065 = vadd.f32 %v937, %v1064
    %v1066 = vpop.f32.mrb[0].mxu0
    %1067 = vdwg.mxu0
    %v1068 = vmul.f32 %v523, %v1030
    %v1069 = vmul.f32 %v528, %v1035
    %v1070 = vmul.f32 %v533, %v1040
    %v1071 = vmul.f32 %v538, %v1045
    %v1072 = vmul.f32 %v543, %v1050
    %v1073 = vmul.f32 %v548, %v1055
    %v1074 = vmul.f32 %v553, %v1060
    %v1075 = vmul.f32 %v558, %v1065
    %v1076 = vadd.f32 %v1068, %v1069
    %v1077 = vadd.f32 %v1076, %v1070
    %v1078 = vadd.f32 %v1077, %v1071
    %v1079 = vadd.f32 %v1078, %v1072
    %v1080 = vadd.f32 %v1079, %v1073
    %v1081 = vadd.f32 %v1080, %v1074
    %v1082 = vadd.f32 %v1081, %v1075
    %v1083 = vrot.slane %v1082, 4
    %v1084 = vadd.f32 %v1082, %v1083
    %v1085 = vrot.slane %v1084, 2
    %v1086 = vadd.f32 %v1084, %v1085
    %v1087 = vrot.slane %v1086, 1
    %v1088 = vadd.f32 %v1086, %v1087
    %s1089 = sld [smem:[#allocation2]]
    %v1090 = vstv %s1089
    %v1091 = vadd.f32 %v1088, %v1090
    %1092 = vst [vmem:[#allocation3] sm:$0x1] %v1091
    // Predicated region
    $region62: #{tpu_custom_call.1} parent=1 // pred_check
      _
    $region63: #{tpu_custom_call.1} parent=1 // pred_check_branch
      %1094 = sbr.rel (0) target = $region65
    $region64: #{tpu_custom_call.1} parent=1 // pred_region
      %s1096 = ssub.s32 16, 16
      %1097 = vsyncadd [#allocation4], %s1096
      %s1099 = sshll.u32 [#allocation3], 4
      %s1100 = int_to_ptr.vmem [resolvable:$true] %s1099
      %1102 = dma.vmem_to_hbm [thread:$0]  %s1100, 16, %s15, [#allocation4]
    $region65: #{tpu_custom_call.1} parent=1 // pred_fallthru
      _
    // Predicated region
    $region66: #{tpu_custom_call.1} parent=1 // pred_check
      _
    $region67: #{tpu_custom_call.1} parent=1 // pred_check_branch
      %1104 = sbr.rel (0) target = $region69
    $region68: #{tpu_custom_call.1} parent=1 // pred_region
      %1105 = dma.done [#allocation4], 16
    $region69: #{tpu_custom_call.1} parent=1 // pred_fallthru
      _
    %1106 = vsyncpa [#allocation4], 1

</llo_original>
